<compile_context>
chip_gen: v5e
topology: v5e:2x2
jax: 0.10.0
libtpu: 0.0.40
codegen_flags: <defaults>
</compile_context>

<pallas_src>
import jax
import jax.numpy as jnp
from jax.experimental import pallas as pl
from jax.experimental.pallas import tpu as pltpu

LANES = 128
MAX_BLK_ROWS = 2048   # (2048,128) f32 = 1 MiB/block; 2 inputs * 2 bufs = 4 MiB VMEM
SMOOTH = 1.0


def _make_dice_kernel(blk_rows, nrows):
    """Kernel factory; blk_rows / nrows are compile-time Python ints."""
    has_row_tail = (nrows % blk_rows) != 0

    def kernel(p_ref, t_ref, o_ref):
        i = pl.program_id(0)

        @pl.when(i == 0)
        def _():
            o_ref[...] = jnp.zeros_like(o_ref)

        p = p_ref[...].astype(jnp.float32)
        t = t_ref[...].astype(jnp.float32)

        if has_row_tail:
            # Last block is partial: mask out-of-range rows (boundary-block
            # padding contents are unspecified).
            row = jax.lax.broadcasted_iota(jnp.int32, (blk_rows, LANES), 0)
            valid = (row + i * blk_rows) < nrows
            p = jnp.where(valid, p, 0.0)
            t = jnp.where(valid, t, 0.0)

        prod = p * t        # intersection stream
        den = p + t         # merged denominator stream

        if blk_rows % 8 == 0:
            g = blk_rows // 8
            # (blk_rows,128) -> (g,8,128) keeps native (8,128) tiling: the
            # axis-0 sum is a tree of plain VPU vreg adds (no XLU).
            o_ref[0] = o_ref[0] + jnp.sum(prod.reshape(g, 8, LANES), axis=0)
            o_ref[1] = o_ref[1] + jnp.sum(den.reshape(g, 8, LANES), axis=0)
        else:
            # Tiny single-block case (nrows < 8-ish): sublane reduce is fine.
            o_ref[0, 0:1, :] = o_ref[0, 0:1, :] + jnp.sum(prod, axis=0, keepdims=True)
            o_ref[1, 0:1, :] = o_ref[1, 0:1, :] + jnp.sum(den, axis=0, keepdims=True)

    return kernel


def dice_val(y_pred, y_true):
    assert y_pred.shape == y_true.shape
    p = jnp.reshape(y_pred, (-1,))
    t = jnp.reshape(y_true, (-1,))
    n = p.shape[0]

    nrows = n // LANES
    main = nrows * LANES

    # Lane tail (< 128 trailing elements): tiny, pure JAX, avoids padding the
    # whole array just to make it a multiple of 128.
    if main != n:
        pt = p[main:].astype(jnp.float32)
        tt = t[main:].astype(jnp.float32)
        tail_int = jnp.sum(pt * tt)
        tail_den = jnp.sum(pt) + jnp.sum(tt)
    else:
        tail_int = jnp.zeros((), jnp.float32)
        tail_den = jnp.zeros((), jnp.float32)

    if nrows == 0:
        inter, den = tail_int, tail_den
    else:
        # Zero-copy reshape when n % 128 == 0 (the common case); only the rare
        # ragged case pays a prefix-slice copy.
        p2 = (p if main == n else p[:main]).reshape(nrows, LANES)
        t2 = (t if main == n else t[:main]).reshape(nrows, LANES)

        blk_rows = min(MAX_BLK_ROWS, nrows)   # == nrows (full dim) or 2048
        nblocks = pl.cdiv(nrows, blk_rows)

        partials = pl.pallas_call(
            _make_dice_kernel(blk_rows, nrows),
            out_shape=jax.ShapeDtypeStruct((2, 8, LANES), jnp.float32),
            grid_spec=pltpu.PrefetchScalarGridSpec(
                num_scalar_prefetch=0,
                grid=(nblocks,),
                in_specs=[
                    pl.BlockSpec((blk_rows, LANES), lambda i: (i, 0)),
                    pl.BlockSpec((blk_rows, LANES), lambda i: (i, 0)),
                ],
                # Same block index for every step -> output stays resident in
                # VMEM across the reduction and is written back once.
                out_specs=pl.BlockSpec((2, 8, LANES), lambda i: (0, 0, 0)),
            ),
            compiler_params=pltpu.CompilerParams(
                dimension_semantics=("arbitrary",),
            ),
        )(p2, t2)

        inter = jnp.sum(partials[0]) + tail_int
        den = jnp.sum(partials[1]) + tail_den

    return (2.0 * inter + SMOOTH) / (den + SMOOTH)


if __name__ == "__main__":
    key = jax.random.PRNGKey(0)
    k1, k2 = jax.random.split(key)
    # small shapes consistent with a segmentation-style NCHW input
    y_pred = jax.random.uniform(k1, (2, 4, 16, 16), dtype=jnp.float32)
    y_true = (jax.random.uniform(k2, (2, 4, 16, 16)) > 0.5).astype(jnp.float32)

    dsc = jax.block_until_ready(dice_val(y_pred, y_true))

    # pure-JAX reference check
    pf = y_pred.reshape(-1)
    tf = y_true.reshape(-1)
    ref = (2.0 * jnp.sum(pf * tf) + SMOOTH) / (jnp.sum(pf) + jnp.sum(tf) + SMOOTH)
    assert jnp.allclose(dsc, ref, rtol=1e-5, atol=1e-6), (dsc, ref)

    print("KERNEL_OK")
</pallas_src>

<mosaic_0001>
module attributes {stable_mosaic.version = 11 : i64} {
  func.func @kernel(%arg0: i32, %arg1: memref<16x128xf32, #tpu.memory_space<vmem>>, %arg2: memref<16x128xf32, #tpu.memory_space<vmem>>, %arg3: memref<2x8x128xf32, #tpu.memory_space<vmem>>) attributes {dimension_semantics = [#tpu.dimension_semantics<arbitrary>], iteration_bounds = array<i64: 1>, scalar_prefetch = 0 : i64, scratch_operands = 0 : i64, tpu.core_type = #tpu.core_type<tc>, window_params = [{transform_indices = @transform_0, window_bounds = array<i64: 16, 128>}, {transform_indices = @transform_1, window_bounds = array<i64: 16, 128>}, {pipeline_mode = #tpu.pipeline_mode<synchronous>, transform_indices = @transform_2, window_bounds = array<i64: 2, 8, 128>}]} {
    %c0_i32 = arith.constant 0 : i32
    %0 = arith.cmpi eq, %arg0, %c0_i32 : i32
    %1 = arith.extui %0 : i1 to i32
    %c0_i32_0 = arith.constant 0 : i32
    %2 = arith.cmpi ne, %1, %c0_i32_0 : i32
    scf.if %2 {
      %cst_16 = arith.constant 0.000000e+00 : f32
      %23 = vector.broadcast %cst_16 : f32 to vector<2x8x128xf32>
      %c0_17 = arith.constant 0 : index
      %c0_18 = arith.constant 0 : index
      %c0_19 = arith.constant 0 : index
      %24 = vector.load %arg3[%c0_17, %c0_18, %c0_19] : memref<2x8x128xf32, #tpu.memory_space<vmem>>, vector<2x8x128xf32>
      tpu.vector_store %arg3[%c0_17, %c0_18, %c0_19], %23 {strides = array<i32>} : memref<2x8x128xf32, #tpu.memory_space<vmem>>, vector<2x8x128xf32>,
    } else {
    }
    %c0 = arith.constant 0 : index
    %c0_1 = arith.constant 0 : index
    %3 = vector.load %arg1[%c0, %c0_1] : memref<16x128xf32, #tpu.memory_space<vmem>>, vector<16x128xf32>
    %c0_2 = arith.constant 0 : index
    %c0_3 = arith.constant 0 : index
    %4 = vector.load %arg2[%c0_2, %c0_3] : memref<16x128xf32, #tpu.memory_space<vmem>>, vector<16x128xf32>
    %5 = arith.mulf %3, %4 : vector<16x128xf32>
    %6 = arith.addf %3, %4 : vector<16x128xf32>
    %c0_4 = arith.constant 0 : index
    %c0_5 = arith.constant 0 : index
    %c0_6 = arith.constant 0 : index
    %7 = vector.load %arg3[%c0_4, %c0_5, %c0_6] : memref<2x8x128xf32, #tpu.memory_space<vmem>>, vector<1x8x128xf32>
    %8 = vector.shape_cast %7 : vector<1x8x128xf32> to vector<8x128xf32>
    %9 = vector.shape_cast %5 : vector<16x128xf32> to vector<2x8x128xf32>
    %cst = arith.constant dense<0.000000e+00> : vector<8x128xf32>
    %10 = vector.multi_reduction <add>, %9, %cst [0] : vector<2x8x128xf32> to vector<8x128xf32>
    %11 = arith.addf %8, %10 : vector<8x128xf32>
    %c0_7 = arith.constant 0 : index
    %c0_8 = arith.constant 0 : index
    %c0_9 = arith.constant 0 : index
    %12 = vector.load %arg3[%c0_7, %c0_8, %c0_9] : memref<2x8x128xf32, #tpu.memory_space<vmem>>, vector<1x8x128xf32>
    %13 = vector.shape_cast %12 : vector<1x8x128xf32> to vector<8x128xf32>
    %14 = vector.shape_cast %11 : vector<8x128xf32> to vector<1x8x128xf32>
    tpu.vector_store %arg3[%c0_7, %c0_8, %c0_9], %14 {strides = array<i32>} : memref<2x8x128xf32, #tpu.memory_space<vmem>>, vector<1x8x128xf32>,
    %c1 = arith.constant 1 : index
    %c0_10 = arith.constant 0 : index
    %c0_11 = arith.constant 0 : index
    %15 = vector.load %arg3[%c1, %c0_10, %c0_11] : memref<2x8x128xf32, #tpu.memory_space<vmem>>, vector<1x8x128xf32>
    %16 = vector.shape_cast %15 : vector<1x8x128xf32> to vector<8x128xf32>
    %17 = vector.shape_cast %6 : vector<16x128xf32> to vector<2x8x128xf32>
    %cst_12 = arith.constant dense<0.000000e+00> : vector<8x128xf32>
    %18 = vector.multi_reduction <add>, %17, %cst_12 [0] : vector<2x8x128xf32> to vector<8x128xf32>
    %19 = arith.addf %16, %18 : vector<8x128xf32>
    %c1_13 = arith.constant 1 : index
    %c0_14 = arith.constant 0 : index
    %c0_15 = arith.constant 0 : index
    %20 = vector.load %arg3[%c1_13, %c0_14, %c0_15] : memref<2x8x128xf32, #tpu.memory_space<vmem>>, vector<1x8x128xf32>
    %21 = vector.shape_cast %20 : vector<1x8x128xf32> to vector<8x128xf32>
    %22 = vector.shape_cast %19 : vector<8x128xf32> to vector<1x8x128xf32>
    tpu.vector_store %arg3[%c1_13, %c0_14, %c0_15], %22 {strides = array<i32>} : memref<2x8x128xf32, #tpu.memory_space<vmem>>, vector<1x8x128xf32>,
    return
  }
  func.func @transform_0(%arg0: i32) -> (i32, i32) {
    %c0_i32 = arith.constant 0 : i32
    %c0_i32_0 = arith.constant 0 : i32
    return %arg0, %c0_i32 : i32, i32
  }
  func.func @transform_1(%arg0: i32) -> (i32, i32) {
    %c0_i32 = arith.constant 0 : i32
    %c0_i32_0 = arith.constant 0 : i32
    return %arg0, %c0_i32 : i32, i32
  }
  func.func @transform_2(%arg0: i32) -> (i32, i32, i32) {
    %c0_i32 = arith.constant 0 : i32
    %c0_i32_0 = arith.constant 0 : i32
    %c0_i32_1 = arith.constant 0 : i32
    %c0_i32_2 = arith.constant 0 : i32
    return %c0_i32, %c0_i32_0, %c0_i32_1 : i32, i32, i32
  }
}

</mosaic_0001>

<llo_original>
// kernel: tpu_custom_call.1
$region0: #{tpu_custom_call.1}
  #allocation0 [shape = 'u32[]', space=smem, size = 0x4, offset = 0x4, fixed_abs, tag = 'smem constant byte address 0x4 - core index']
  #allocation1 [shape = 'u32[72,128]{1,0:T(1,128)}', space=vmem, size = 0x9000, scoped, tag = 'internal scratch']
  %s0 = inlined_call_operand.hbm [shape: f32[16,128], index: 0, kind: input, shape index: {}]
  %s1 = inlined_call_operand.hbm [shape: f32[16,128], index: 1, kind: input, shape index: {}]
  %s2 = inlined_call_operand.hbm [shape: f32[2,8,128], index: 2, kind: output, shape index: {}]
  %s3 = sld [smem:[#allocation0]]
  $region30: #{tpu_custom_call.1} parent=0
    _
  %s5 = ssub.s32 1, %s3
  %s6 = scalar_select 0, %s5, %s3
  $region1: #{tpu_custom_call.1} parent=0
    #allocation2 [shape = 'u8[8192]{0}', space=vmem, size = 0x2000, scoped, tag = 'input window, operand 0, single buffered']
    #allocation3 [shape = 's32[1]{0}', space=sflag, size = 0x4, scoped, tag = 'scoped memory for tpu_custom_call.1']
    #allocation4 [shape = 's32[1]{0}', space=sflag, size = 0x4, scoped, tag = 'scoped memory for tpu_custom_call.1']
    #allocation5 [shape = 'u8[8192]{0}', space=vmem, size = 0x2000, scoped, tag = 'input window, operand 1, single buffered']
    #allocation6 [shape = 's32[1]{0}', space=sflag, size = 0x4, scoped, tag = 'scoped memory for tpu_custom_call.1']
    #allocation7 [shape = 'u8[8192]{0}', space=vmem, size = 0x2000, scoped, tag = 'output window, operand 0, single buffered']
    %7 = vsyncpa [#allocation3], 0
    %8 = vsyncpa [#allocation6], 0
    %9 = vsyncpa [#allocation4], 0
    // Predicated region
    $region2: #{tpu_custom_call.1} parent=1 // pred_check
      _
    $region3: #{tpu_custom_call.1} parent=1 // pred_check_branch
      %11 = sbr.rel (0) target = $region5
    $region4: #{tpu_custom_call.1} parent=1 // pred_region
      %13 = vsyncadd [#allocation3], 0
      %s14 = sshll.u32 %s0, 4
      %s15 = int_to_ptr.hbm [resolvable:$true] %s14
      %s16 = sshll.u32 [#allocation2], 4
      %s17 = int_to_ptr.vmem [resolvable:$true] %s16
      %22 = dma.hbm_to_vmem [thread:$0]  %s15, 256, %s17, [#allocation3], 128, 128, 8
    $region5: #{tpu_custom_call.1} parent=1 // pred_fallthru
      _
    // Predicated region
    $region6: #{tpu_custom_call.1} parent=1 // pred_check
      _
    $region7: #{tpu_custom_call.1} parent=1 // pred_check_branch
      %24 = sbr.rel (0) target = $region9
    $region8: #{tpu_custom_call.1} parent=1 // pred_region
      %26 = vsyncadd [#allocation6], 0
      %s27 = sshll.u32 %s1, 4
      %s28 = int_to_ptr.hbm [resolvable:$true] %s27
      %s29 = sshll.u32 [#allocation5], 4
      %s30 = int_to_ptr.vmem [resolvable:$true] %s29
      %35 = dma.hbm_to_vmem [thread:$0]  %s28, 256, %s30, [#allocation6], 128, 128, 8
    $region9: #{tpu_custom_call.1} parent=1 // pred_fallthru
      _
    // Predicated region
    $region10: #{tpu_custom_call.1} parent=1 // pred_check
      _
    $region11: #{tpu_custom_call.1} parent=1 // pred_check_branch
      %37 = sbr.rel (0) target = $region13
    $region12: #{tpu_custom_call.1} parent=1 // pred_region
      %39 = dma.done [#allocation3], 256
    $region13: #{tpu_custom_call.1} parent=1 // pred_fallthru
      _
    // Predicated region
    $region14: #{tpu_custom_call.1} parent=1 // pred_check
      _
    $region15: #{tpu_custom_call.1} parent=1 // pred_check_branch
      %41 = sbr.rel (0) target = $region17
    $region16: #{tpu_custom_call.1} parent=1 // pred_region
      %43 = dma.done [#allocation6], 256
    $region17: #{tpu_custom_call.1} parent=1 // pred_fallthru
      _
    %p44 = scmp.eq.s32.totalorder 0, 0
    // Predicated region
    $region18: #{tpu_custom_call.1} parent=1 // pred_check
      %p45 = pneg %p44
    $region19: #{tpu_custom_call.1} parent=1 // pred_check_branch
      %47 = sbr.rel (%p45) target = $region21
    $region20: #{tpu_custom_call.1} parent=1 // pred_region
      %48 = vst [vmem:[#allocation7] sm:$0xff] 0.0
      %49 = vst [vmem:[#allocation7 + $0x8] sm:$0xff] 0.0
    $region21: #{tpu_custom_call.1} parent=1 // pred_fallthru
      _
    %v50 = vld [vmem:[#allocation2] sm:$0xff]
    %v51 = vld [vmem:[#allocation2 + $0x8] sm:$0xff]
    %v52 = vld [vmem:[#allocation5] sm:$0xff]
    %v53 = vld [vmem:[#allocation5 + $0x8] sm:$0xff]
    %v54 = vmul.f32 %v50, %v52
    %v55 = vmul.f32 %v51, %v53
    %v56 = vadd.f32 %v50, %v52
    %v57 = vadd.f32 %v51, %v53
    %v58 = vld [vmem:[#allocation7] sm:$0xff]
    %v59 = vadd.f32 %v54, %v55
    %v60 = vadd.f32 %v58, %v59
    %61 = vst [vmem:[#allocation7] sm:$0xff] %v60
    %s62 = scalar_lea.vmem [#allocation7], 8
    %v63 = vld [vmem:[%s62] sm:$0xff]
    %v64 = vadd.f32 %v56, %v57
    %v65 = vadd.f32 %v63, %v64
    %66 = vst [vmem:[%s62] sm:$0xff] %v65
    // Predicated region
    $region22: #{tpu_custom_call.1} parent=1 // pred_check
      _
    $region23: #{tpu_custom_call.1} parent=1 // pred_check_branch
      %68 = sbr.rel (0) target = $region25
    $region24: #{tpu_custom_call.1} parent=1 // pred_region
      %70 = vsyncadd [#allocation4], 0
      %s71 = sshll.u32 [#allocation7], 4
      %s72 = int_to_ptr.vmem [resolvable:$true] %s71
      %s73 = sshll.u32 %s2, 4
      %s74 = int_to_ptr.hbm [resolvable:$true] %s73
      %79 = dma.vmem_to_hbm [thread:$0]  %s72, 256, %s74, [#allocation4], 128, 128, 8
    $region25: #{tpu_custom_call.1} parent=1 // pred_fallthru
      _
    // Predicated region
    $region26: #{tpu_custom_call.1} parent=1 // pred_check
      _
    $region27: #{tpu_custom_call.1} parent=1 // pred_check_branch
      %81 = sbr.rel (0) target = $region29
    $region28: #{tpu_custom_call.1} parent=1 // pred_region
      %83 = dma.done [#allocation4], 256
    $region29: #{tpu_custom_call.1} parent=1 // pred_fallthru
      _
    %84 = vsyncpa [#allocation3], 1
    %85 = vsyncpa [#allocation6], 1
    %86 = vsyncpa [#allocation4], 1

</llo_original>
